<compile_context>
chip_gen: v7x
topology: tpu7x:2x2x1
jax: 0.10.0
libtpu: 0.0.40
codegen_flags: <defaults>
</compile_context>

<pallas_src>
import jax
import jax.numpy as jnp
from jax.experimental import pallas as pl
from jax.experimental.pallas import tpu as pltpu


# ---------------------------------------------------------------------------
# Preferred path: zero-copy (donation + aliasing, no data movement).
# ---------------------------------------------------------------------------
def _alias_touch_kernel(x_ref, o_ref):
    # Output buffer == input buffer (input_output_aliases + donated arg), so
    # the output bits are already correct.  `touch` just gives the aliased
    # output a write dependency so it counts as produced by this kernel.
    del x_ref
    pltpu.touch(o_ref)


def _unflatten_zero_copy_impl(x, C, H, W):
    N, F = x.shape
    assert F == C * H * W, f"expected last dim {C * H * W}, got {F}"
    out = pl.pallas_call(
        _alias_touch_kernel,
        out_shape=jax.ShapeDtypeStruct((N, F), x.dtype),
        in_specs=[pl.BlockSpec(memory_space=pl.ANY)],
        out_specs=pl.BlockSpec(memory_space=pl.ANY),
        input_output_aliases={0: 0},
        cost_estimate=pl.CostEstimate(flops=0, transcendentals=0,
                                      bytes_accessed=0),
    )(x)
    # Row-major reshape == torch .view(N, C, H, W); a bitcast inside jit.
    return out.reshape(N, C, H, W)


# donate_argnums=0 makes the alias real: no defensive copy of the operand.
unflatten = jax.jit(_unflatten_zero_copy_impl, static_argnums=(1, 2, 3),
                    donate_argnums=0)


# ---------------------------------------------------------------------------
# Fallback path: tiled identity copy (for callers that cannot donate x).
# ---------------------------------------------------------------------------
def _copy_kernel(x_ref, o_ref):
    o_ref[...] = x_ref[...]


def _pick_lanes(total, F):
    # A multiple-of-128 last dim gives full-width (unmasked) vector stores.
    # If total % 128 != 0 no divisor of `total` can be a multiple of 128, so
    # fall back to the original row width (full-dim block is still legal).
    return 128 if total % 128 == 0 else F


def _tile_params():
    """(target_tile_bytes, vmem_limit_bytes) tuned per TPU generation."""
    kind = ""
    try:
        kind = jax.devices()[0].device_kind.lower()
    except Exception:
        pass
    if "v5 lite" in kind or "v5e" in kind or "v5litepod" in kind:
        # v5e: ~820 GB/s HBM, 16 MiB default scoped VMEM; 3 MiB tiles already
        # amortize the ~0.35us/step pipeline overhead (4 live buffers = 12 MiB).
        return 3 * 2**20, 24 * 2**20
    # v6e / v7x: faster HBM makes the fixed per-step overhead relatively
    # larger; 8 MiB tiles (4 live buffers = 32 MiB) with a raised scoped
    # limit (48 MiB is safe: v7x physical VMEM is 64 MiB, v6e is 128 MiB).
    return 8 * 2**20, 48 * 2**20


def _unflatten_copy_impl(x, C, H, W):
    N, F = x.shape
    assert F == C * H * W, f"expected last dim {C * H * W}, got {F}"

    total = N * F
    itemsize = jnp.dtype(x.dtype).itemsize

    lanes = _pick_lanes(total, F)
    rows = total // lanes
    x2 = x.reshape(rows, lanes)          # free row-major bitcast inside jit

    # Sublane multiple by dtype: 8 (f32), 16 (bf16), 32 (int8).
    # TODO(synk): sub-byte dtypes (int4/fp4) would need packed-sublane handling.
    sublane = max(8, 32 // max(itemsize, 1))

    target_bytes, vmem_limit = _tile_params()
    tm = (target_bytes // (lanes * itemsize)) // sublane * sublane
    tm = max(tm, sublane)
    tm = min(tm, rows)                   # block == full dim is always legal

    if rows > sublane:
        # Force >= 2 grid steps so dimension_semantics=("parallel",) can shard
        # work across both v7x TensorCores even for small inputs.
        half = pl.cdiv(pl.cdiv(rows, 2), sublane) * sublane
        tm = min(tm, half)

    # Prefer a tm that divides rows evenly (no ragged masked tail block), but
    # don't shrink the tile by more than ~2x for it.
    if tm < rows and tm % sublane == 0:
        for cand in range(tm, max(sublane, tm // 2) - 1, -sublane):
            if rows % cand == 0:
                tm = cand
                break

    grid = (pl.cdiv(rows, tm),)

    copied = pl.pallas_call(
        _copy_kernel,
        out_shape=jax.ShapeDtypeStruct((rows, lanes), x.dtype),
        grid=grid,
        in_specs=[pl.BlockSpec((tm, lanes), lambda i: (i, 0))],
        out_specs=pl.BlockSpec((tm, lanes), lambda i: (i, 0)),
        input_output_aliases={0: 0},
        cost_estimate=pl.CostEstimate(
            flops=0, transcendentals=0, bytes_accessed=2 * total * itemsize),
        compiler_params=pltpu.CompilerParams(
            dimension_semantics=("parallel",),
            vmem_limit_bytes=vmem_limit),
    )(x2)

    return copied.reshape(N, C, H, W)


unflatten_copy = jax.jit(_unflatten_copy_impl, static_argnums=(1, 2, 3),
                         donate_argnums=0)


if __name__ == "__main__":
    # Shapes consistent with the module defaults: C=128, H=W=7, batch=2.
    N, C, H, W = 2, 128, 7, 7

    key = jax.random.PRNGKey(0)
    x = jax.random.normal(key, (N, C * H * W), dtype=jnp.float32)

    # Reference (same semantics as torch .view on contiguous input).
    y_ref = x.reshape(N, C, H, W)

    # 1) Zero-copy path (donated input -> pass a fresh copy of x).
    #    Guarded so the script still validates the copy path if this runtime
    #    rejects the no-op aliased custom call.
    zero_copy_ok = False
    try:
        y0 = jax.block_until_ready(unflatten(jnp.copy(x), C, H, W))
        assert y0.shape == (N, C, H, W), y0.shape
        assert y0.dtype == x.dtype
        assert bool(jnp.array_equal(y0, y_ref))
        zero_copy_ok = True
    except AssertionError:
        raise
    except Exception:
        zero_copy_ok = False  # fall back to the tiled copy kernel below

    # 2) Tiled-copy path (also donated; pass another fresh copy of x).
    y1 = jax.block_until_ready(unflatten_copy(jnp.copy(x), C, H, W))
    assert y1.shape == (N, C, H, W), y1.shape
    assert y1.dtype == x.dtype
    assert bool(jnp.array_equal(y1, y_ref))

    print("KERNEL_OK")
</pallas_src>

<mosaic_0001>
module attributes {stable_mosaic.version = 11 : i64} {
  func.func @_alias_touch_kernel(%arg0: memref<2x6272xf32, #tpu.memory_space<any>>, %arg1: memref<2x6272xf32, #tpu.memory_space<any>>) attributes {dimension_semantics = [], scalar_prefetch = 0 : i64, scratch_operands = 0 : i64, tpu.core_type = #tpu.core_type<tc>} {
    return
  }
}

module attributes {stable_mosaic.version = 11 : i64} {
  func.func @_copy_kernel(%arg0: i32, %arg1: memref<56x128xf32, #tpu.memory_space<vmem>>, %arg2: memref<56x128xf32, #tpu.memory_space<vmem>>) attributes {dimension_semantics = [#tpu.dimension_semantics<parallel>], iteration_bounds = array<i64: 2>, scalar_prefetch = 0 : i64, scratch_operands = 0 : i64, tpu.core_type = #tpu.core_type<tc>, window_params = [{transform_indices = @transform_0, window_bounds = array<i64: 56, 128>}, {transform_indices = @transform_1, window_bounds = array<i64: 56, 128>}]} {
    %c0 = arith.constant 0 : index
    %c0_0 = arith.constant 0 : index
    %0 = vector.load %arg1[%c0, %c0_0] : memref<56x128xf32, #tpu.memory_space<vmem>>, vector<56x128xf32>
    %c0_1 = arith.constant 0 : index
    %c0_2 = arith.constant 0 : index
    %1 = vector.load %arg2[%c0_1, %c0_2] : memref<56x128xf32, #tpu.memory_space<vmem>>, vector<56x128xf32>
    tpu.vector_store %arg2[%c0_1, %c0_2], %0 {strides = array<i32>} : memref<56x128xf32, #tpu.memory_space<vmem>>, vector<56x128xf32>,
    return
  }
  func.func @transform_0(%arg0: i32) -> (i32, i32) {
    %c0_i32 = arith.constant 0 : i32
    %c0_i32_0 = arith.constant 0 : i32
    return %arg0, %c0_i32 : i32, i32
  }
  func.func @transform_1(%arg0: i32) -> (i32, i32) {
    %c0_i32 = arith.constant 0 : i32
    %c0_i32_0 = arith.constant 0 : i32
    return %arg0, %c0_i32 : i32, i32
  }
}

</mosaic_0001>

<llo_original>
// kernel: _unflatten_zero_copy_impl.1
$region0: #{_unflatten_zero_copy_impl.1}
  #allocation0 [shape = 'u32[]', space=smem, size = 0x4, offset = 0x4, fixed_abs, tag = 'smem constant byte address 0x4 - core index']
  #allocation1 [shape = 'u32[144,128]{1,0:T(1,128)}', space=vmem, size = 0x12000, scoped, tag = 'internal scratch']
  %s0 = inlined_call_operand.hbm [shape: f32[2,6272], index: 0, kind: input, shape index: {}, may-alias: {0,1}]
  %s1 = inlined_call_operand.hbm [shape: f32[2,6272], index: 1, kind: output, shape index: {}, may-alias: {0,1}]
  %s2 = sld [smem:[#allocation0]]
  $region2: #{_unflatten_zero_copy_impl.1} parent=0
    _
  %s4 = ssub.s32 1, %s2
  %s5 = scalar_select 0, %s4, %s2

// kernel: _unflatten_copy_impl.1
$region0: #{_unflatten_copy_impl.1}
  #allocation0 [shape = 'u32[]', space=smem, size = 0x4, offset = 0x4, fixed_abs, tag = 'smem constant byte address 0x4 - core index']
  #allocation1 [shape = 'u32[144,128]{1,0:T(1,128)}', space=vmem, size = 0x12000, scoped, tag = 'internal scratch']
  %s0 = inlined_call_operand.vmem [shape: f32[98,128], index: 0, kind: input, shape index: {}, may-alias: {0,1}]
  %s1 = inlined_call_operand.vmem [shape: f32[98,128], index: 1, kind: output, shape index: {}, may-alias: {0,1}]
  %s2 = sld [smem:[#allocation0]]
  $region85: #{_unflatten_copy_impl.1} parent=0
    _
  %s4 = ssub.s32 1, %s2
  %s5 = scalar_select 0, %s4, %s2
  $region1: #{_unflatten_copy_impl.1} parent=0
    #allocation2 [shape = 'u8[57344]{0}', space=vmem, size = 0xe000, scoped, tag = 'output window, operand 0']
    loop: start=0, step=1, limit=4
    $region2: #{_unflatten_copy_impl.1} parent=1 // loop_pre_header
      _
    $region3: #{_unflatten_copy_impl.1} parent=1 // loop_header
      %s7 = sphi 0, %s11
      %p8 = scmp.ge.s32.totalorder %s7, 4
      %s17 = sphi 0, %s19
      %s20 = sphi 0, %s17
      %s21 = sphi 0, %s20
      %s37 = sphi 0, %s21
      %s43 = sphi 0, %s45
      %s46 = sphi 0, %s43
      %s47 = sphi 0, %s46
      %s63 = sphi 0, %s47
    $region4: #{_unflatten_copy_impl.1} parent=1 // loop_header_branch
      %10 = sbr.rel (%p8) target = $region8
    $region5: #{_unflatten_copy_impl.1} parent=1 // loop_body
      %s12 = ssub.s32 %s7, 1
      %s13 = ssub.s32 %s7, 2
      %s14 = sadd.s32 %s7, 1
      %s15 = ssub.s32 %s7, %s14
      %p16 = scmp.eq.s32.totalorder %s15, 0
      %s18 = sadd.s32 %s17, 1
      %s19 = scalar_select %p16, %s17, %s18
      %p22 = pneg %p16
      %p23 = scmp.eq.s32.totalorder %s7, 1
      %p24 = por %p22, %p23
      %p25 = scmp.ne.s32.totalorder %s17, %s20
      %p26 = scmp.eq.s32.totalorder %s7, 0
      %p27 = por %p25, %p26
      %p28 = scmp.ne.s32.totalorder %s17, %s20
      %p29 = scmp.eq.s32.totalorder %s12, 1
      %p30 = por %p28, %p29
      %p31 = scmp.ne.s32.totalorder %s20, %s21
      %p32 = scmp.eq.s32.totalorder %s12, 0
      %p33 = por %p31, %p32
      %p34 = scmp.ne.s32.totalorder %s20, %s21
      %p35 = scmp.eq.s32.totalorder %s13, 1
      %p36 = por %p34, %p35
      %p38 = scmp.ne.s32.totalorder %s21, %s37
      %p39 = scmp.eq.s32.totalorder %s13, 0
      %p40 = por %p38, %p39
      %s41 = ssub.s32 %s7, %s14
      %p42 = scmp.eq.s32.totalorder %s41, 0
      %s44 = sadd.s32 %s43, 1
      %s45 = scalar_select %p42, %s43, %s44
      %p48 = pneg %p42
      %p49 = scmp.eq.s32.totalorder %s7, 1
      %p50 = por %p48, %p49
      %p51 = scmp.ne.s32.totalorder %s43, %s46
      %p52 = scmp.eq.s32.totalorder %s7, 0
      %p53 = por %p51, %p52
      %p54 = scmp.ne.s32.totalorder %s43, %s46
      %p55 = scmp.eq.s32.totalorder %s12, 1
      %p56 = por %p54, %p55
      %p57 = scmp.ne.s32.totalorder %s46, %s47
      %p58 = scmp.eq.s32.totalorder %s12, 0
      %p59 = por %p57, %p58
      %p60 = scmp.ne.s32.totalorder %s46, %s47
      %p61 = scmp.eq.s32.totalorder %s13, 1
      %p62 = por %p60, %p61
      %p64 = scmp.ne.s32.totalorder %s47, %s63
      %p65 = scmp.eq.s32.totalorder %s13, 0
      %p66 = por %p64, %p65
      %p67 = scmp.le.s32.totalorder 1, %s7
      %p68 = scmp.lt.s32.totalorder %s7, 3
      %p69 = pnand %p67, %p68
      %p70 = pneg %p69
      // Predicated region
      $region9: #{_unflatten_copy_impl.1} parent=5 // pred_check
        _
      $region10: #{_unflatten_copy_impl.1} parent=5 // pred_check_branch
        %72 = sbr.rel (%p69) target = $region12
      $region11: #{_unflatten_copy_impl.1} parent=5 // pred_region
        %s73 = ssub.s32 %s7, 1
      $region12: #{_unflatten_copy_impl.1} parent=5 // pred_fallthru
        _
      %p74 = scmp.lt.s32.totalorder %s7, 2
      // Predicated region
      $region13: #{_unflatten_copy_impl.1} parent=5 // pred_check
        %p75 = pneg %p74
      $region14: #{_unflatten_copy_impl.1} parent=5 // pred_check_branch
        %77 = sbr.rel (%p75) target = $region16
      $region15: #{_unflatten_copy_impl.1} parent=5 // pred_region
        // Predicated region
        $region17: #{_unflatten_copy_impl.1} parent=15 // pred_check
          %p78 = pneg %p27
        $region18: #{_unflatten_copy_impl.1} parent=15 // pred_check_branch
          %80 = sbr.rel (%p78) target = $region20
        $region19: #{_unflatten_copy_impl.1} parent=15 // pred_region
          %s81 = smul.u32 7, %s7
          %s82 = ssub.s32 13, %s81
          %p83 = scmp.lt.s32.totalorder %s82, 7
          %s84 = scalar_select %p83, %s82, 7
          %s85 = smul.u32 128, %s84
          %p86 = scmp.lt.s32.totalorder %s81, 12
          %s87 = scalar_select %p86, %s81, 12
          %s88 = smul.addr %s87, 8
          %s89 = scalar_lea.vmem %s0, %s88
          %s90 = smul.u32 7, %s7
          %s91 = ssub.s32 13, %s90
          %p92 = scmp.lt.s32.totalorder %s91, 7
          %s93 = scalar_select %p92, %s91, 7
          %s94 = smul.u32 128, %s93
        $region20: #{_unflatten_copy_impl.1} parent=15 // pred_fallthru
          _
      $region16: #{_unflatten_copy_impl.1} parent=5 // pred_fallthru
        _
      %p95 = scmp.le.s32.totalorder 1, %s7
      %p96 = scmp.lt.s32.totalorder %s7, 3
      %p97 = pnand %p95, %p96
      %p98 = pneg %p97
      // Predicated region
      $region21: #{_unflatten_copy_impl.1} parent=5 // pred_check
        _
      $region22: #{_unflatten_copy_impl.1} parent=5 // pred_check_branch
        %100 = sbr.rel (%p97) target = $region24
      $region23: #{_unflatten_copy_impl.1} parent=5 // pred_region
        %s101 = ssub.s32 %s7, 1
        %s102 = smul.u32 7, %s12
        %s103 = ssub.s32 13, %s102
        %p104 = scmp.lt.s32.totalorder %s103, 7
        %s105 = scalar_select %p104, %s103, 7
        %s106 = smul.u32 128, %s105
        %p107 = scmp.lt.s32.totalorder %s102, 12
        %s108 = scalar_select %p107, %s102, 12
        %s109 = smul.addr %s108, 8
        %s110 = scalar_lea.vmem %s0, %s109
        %p111 = pneg %p33
        %p112 = pneg %p30
        %p113 = pneg %p59
        %p114 = pneg %p56
        %s115 = sand.u32 %s46, 1
        %s116 = sand.u32 %s46, 1
        %s117 = smul.addr %s116, 56
        %s118 = scalar_lea.vmem [#allocation2], %s117
        %s119 = smul.u32 7, %s12
        %s120 = ssub.s32 13, %s119
        %p121 = scmp.lt.s32.totalorder %s120, 7
        %s122 = scalar_select %p121, %s120, 7
        %s123 = smul.u32 128, %s122
        %p124 = scmp.lt.s32.totalorder %s119, 12
        %s125 = scalar_select %p124, %s119, 12
        %s126 = smul.addr %s125, 8
        %s127 = scalar_lea.vmem %s0, %s126
        %s128 = smul.u32 7, %s12
        %s129 = ssub.s32 13, %s128
        %p130 = scmp.lt.s32.totalorder %s129, 7
        %s131 = scalar_select %p130, %s129, 7
        %s132 = smul.u32 128, %s131
        %s133 = smul.u32 7, %s12
        %s134 = ssub.s32 13, %s133
        %p135 = scmp.lt.s32.totalorder %s134, 7
        %s136 = scalar_select %p135, %s134, 7
        %s137 = smul.u32 128, %s136
        %v138 = vld [vmem:[%s127] sm:$0xff]
        %v139 = vld [vmem:[%s127 + $0x8] sm:$0xff]
        %v140 = vld [vmem:[%s127 + $0x10] sm:$0xff]
        %v141 = vld [vmem:[%s127 + $0x18] sm:$0xff]
        %v142 = vld [vmem:[%s127 + $0x20] sm:$0xff]
        %v143 = vld [vmem:[%s127 + $0x28] sm:$0xff]
        %v144 = vld [vmem:[%s127 + $0x30] sm:$0xff]
        %145 = vst [vmem:[%s118] sm:$0xff] %v138
        %146 = vst [vmem:[%s118 + $0x8] sm:$0xff] %v139
        %147 = vst [vmem:[%s118 + $0x10] sm:$0xff] %v140
        %148 = vst [vmem:[%s118 + $0x18] sm:$0xff] %v141
        %149 = vst [vmem:[%s118 + $0x20] sm:$0xff] %v142
        %150 = vst [vmem:[%s118 + $0x28] sm:$0xff] %v143
        %151 = vst [vmem:[%s118 + $0x30] sm:$0xff] %v144
        %s152 = sand.u32 %s46, 1
        %s153 = sand.u32 %s46, 1
        %s154 = smul.addr %s153, 56
        %s155 = scalar_lea.vmem [#allocation2], %s154
        // Predicated region
        $region25: #{_unflatten_copy_impl.1} parent=23 // pred_check
          %p156 = pneg %p56
        $region26: #{_unflatten_copy_impl.1} parent=23 // pred_check_branch
          %158 = sbr.rel (%p156) target = $region28
        $region27: #{_unflatten_copy_impl.1} parent=23 // pred_region
          %s159 = smul.u32 7, %s12
          %s160 = ssub.s32 13, %s159
          %p161 = scmp.lt.s32.totalorder %s160, 7
          %s162 = scalar_select %p161, %s160, 7
          %s163 = smul.u32 128, %s162
          %p164 = scmp.ne.s32.totalorder 0, %s163
          %s165 = smul.addr %s159, 8
          %s166 = scalar_lea.vmem %s1, %s165
          // Predicated region
          $region29: #{_unflatten_copy_impl.1} parent=27 // pred_check
            %p167 = pneg %p164
          $region30: #{_unflatten_copy_impl.1} parent=27 // pred_check_branch
            %169 = sbr.rel (%p167) target = $region32
          $region31: #{_unflatten_copy_impl.1} parent=27 // pred_region
            // Predicated region
            $region33: #{_unflatten_copy_impl.1} parent=31 // pred_check
              _
            $region34: #{_unflatten_copy_impl.1} parent=31 // pred_check_branch
              %171 = sbr.rel (0) target = $region36
            $region35: #{_unflatten_copy_impl.1} parent=31 // pred_region
              // Predicated region
              $region55: #{_unflatten_copy_impl.1} parent=35 // pred_check
                _
              $region56: #{_unflatten_copy_impl.1} parent=35 // pred_check_branch
                %233 = sbr.rel (0) target = $region58
              $region57: #{_unflatten_copy_impl.1} parent=35 // pred_region
                %s234 = sdiv.u32.pop %s162, 7
                %s235 = srem.u32.pop %s162, 7
                // While loop
                $region59: #{_unflatten_copy_impl.1} parent=57 // loop_pre_header
                  _
                $region60: #{_unflatten_copy_impl.1} parent=57 // loop_header
                  %s237 = sphi 0, %s239
                  %p238 = scmp.ge.s32.totalorder %s237, %s234
                  %s242 = sphi 0, %s261
                  %s243 = sphi %s155, %s264
                  %s244 = sphi %s166, %s265
                $region61: #{_unflatten_copy_impl.1} parent=57 // loop_header_branch
                  %241 = sbr.rel (%p238) target = $region65
                $region62: #{_unflatten_copy_impl.1} parent=57 // loop_body
                  %v245 = vld [vmem:[%s243] sm:$0xff]
                  %246 = vst [vmem:[%s244] sm:$0xff] %v245
                  %v247 = vld [vmem:[%s243 + $0x8] sm:$0xff]
                  %248 = vst [vmem:[%s244 + $0x8] sm:$0xff] %v247
                  %v249 = vld [vmem:[%s243 + $0x10] sm:$0xff]
                  %250 = vst [vmem:[%s244 + $0x10] sm:$0xff] %v249
                  %v251 = vld [vmem:[%s243 + $0x18] sm:$0xff]
                  %252 = vst [vmem:[%s244 + $0x18] sm:$0xff] %v251
                  %v253 = vld [vmem:[%s243 + $0x20] sm:$0xff]
                  %254 = vst [vmem:[%s244 + $0x20] sm:$0xff] %v253
                  %v255 = vld [vmem:[%s243 + $0x28] sm:$0xff]
                  %256 = vst [vmem:[%s244 + $0x28] sm:$0xff] %v255
                  %v257 = vld [vmem:[%s243 + $0x30] sm:$0xff]
                  %258 = vst [vmem:[%s244 + $0x30] sm:$0xff] %v257
                  %s259 = sadd.s32 1, %s242
                  %p260 = scmp.ge.s32.totalorder %s259, %s234
                  %s261 = scalar_select %p260, 0, %s259
                  %s262 = smul.u32 %s261, 56
                  %s263 = smul.u32 %s261, 56
                  %s264 = scalar_lea.vmem %s155, %s262 [#allocation2]
                  %s265 = scalar_lea.vmem %s166, %s263
                $region63: #{_unflatten_copy_impl.1} parent=57 // loop_footer
                  %s239 = sadd.s32 %s237, 1
                $region64: #{_unflatten_copy_impl.1} parent=57 // loop_footer_branch
                  %236 = sbr.rel target = $region60
                $region65: #{_unflatten_copy_impl.1} parent=57 // loop_exit
                  _
                %s266 = sdiv.u32.pop %s162, 7
                %s267 = srem.u32.pop %s162, 7
                %s268 = smul.u32 %s266, 7
                %s269 = smul.u32 8, %s268
                %s270 = scalar_lea.vmem %s155, %s269 [#allocation2]
                %s271 = smul.u32 8, %s268
                %s272 = scalar_lea.vmem %s166, %s271
                // While loop
                $region66: #{_unflatten_copy_impl.1} parent=57 // loop_pre_header
                  _
                $region67: #{_unflatten_copy_impl.1} parent=57 // loop_header
                  %s274 = sphi 0, %s276
                  %p275 = scmp.ge.s32.totalorder %s274, %s267
                  %s279 = sphi 0, %s286
                  %s280 = sphi %s270, %s289
                  %s281 = sphi %s272, %s290
                $region68: #{_unflatten_copy_impl.1} parent=57 // loop_header_branch
                  %278 = sbr.rel (%p275) target = $region72
                $region69: #{_unflatten_copy_impl.1} parent=57 // loop_body
                  %v282 = vld [vmem:[%s280] sm:$0xff]
                  %283 = vst [vmem:[%s281] sm:$0xff] %v282
                  %s284 = sadd.s32 1, %s279
                  %p285 = scmp.ge.s32.totalorder %s284, %s267
                  %s286 = scalar_select %p285, 0, %s284
                  %s287 = smul.u32 %s286, 8
                  %s288 = smul.u32 %s286, 8
                  %s289 = scalar_lea.vmem %s270, %s287 [#allocation2]
                  %s290 = scalar_lea.vmem %s272, %s288
                $region70: #{_unflatten_copy_impl.1} parent=57 // loop_footer
                  %s276 = sadd.s32 %s274, 1
                $region71: #{_unflatten_copy_impl.1} parent=57 // loop_footer_branch
                  %273 = sbr.rel target = $region67
                $region72: #{_unflatten_copy_impl.1} parent=57 // loop_exit
                  _
              $region58: #{_unflatten_copy_impl.1} parent=35 // pred_fallthru
                _
              // Predicated region
              $region73: #{_unflatten_copy_impl.1} parent=35 // pred_check
                _
              $region74: #{_unflatten_copy_impl.1} parent=35 // pred_check_branch
                %292 = sbr.rel target = $region76
              $region75: #{_unflatten_copy_impl.1} parent=35 // pred_region
                _
              $region76: #{_unflatten_copy_impl.1} parent=35 // pred_fallthru
                _
            $region36: #{_unflatten_copy_impl.1} parent=31 // pred_fallthru
              _
            // Predicated region
            $region37: #{_unflatten_copy_impl.1} parent=31 // pred_check
              _
            $region38: #{_unflatten_copy_impl.1} parent=31 // pred_check_branch
              %173 = sbr.rel target = $region40
            $region39: #{_unflatten_copy_impl.1} parent=31 // pred_region
              %s175 = sdiv.u32.pop %s162, 7
              %s176 = srem.u32.pop %s162, 7
              // While loop
              $region41: #{_unflatten_copy_impl.1} parent=39 // loop_pre_header
                _
              $region42: #{_unflatten_copy_impl.1} parent=39 // loop_header
                %s178 = sphi 0, %s180
                %p179 = scmp.ge.s32.totalorder %s178, %s175
                %s183 = sphi 0, %s202
                %s184 = sphi %s155, %s205
                %s185 = sphi %s166, %s206
              $region43: #{_unflatten_copy_impl.1} parent=39 // loop_header_branch
                %182 = sbr.rel (%p179) target = $region47
              $region44: #{_unflatten_copy_impl.1} parent=39 // loop_body
                %v186 = vld [vmem:[%s184] sm:$0xff]
                %187 = vst [vmem:[%s185] sm:$0xff] %v186
                %v188 = vld [vmem:[%s184 + $0x8] sm:$0xff]
                %189 = vst [vmem:[%s185 + $0x8] sm:$0xff] %v188
                %v190 = vld [vmem:[%s184 + $0x10] sm:$0xff]
                %191 = vst [vmem:[%s185 + $0x10] sm:$0xff] %v190
                %v192 = vld [vmem:[%s184 + $0x18] sm:$0xff]
                %193 = vst [vmem:[%s185 + $0x18] sm:$0xff] %v192
                %v194 = vld [vmem:[%s184 + $0x20] sm:$0xff]
                %195 = vst [vmem:[%s185 + $0x20] sm:$0xff] %v194
                %v196 = vld [vmem:[%s184 + $0x28] sm:$0xff]
                %197 = vst [vmem:[%s185 + $0x28] sm:$0xff] %v196
                %v198 = vld [vmem:[%s184 + $0x30] sm:$0xff]
                %199 = vst [vmem:[%s185 + $0x30] sm:$0xff] %v198
                %s200 = sadd.s32 1, %s183
                %p201 = scmp.ge.s32.totalorder %s200, %s175
                %s202 = scalar_select %p201, 0, %s200
                %s203 = smul.u32 %s202, 56
                %s204 = smul.u32 %s202, 56
                %s205 = scalar_lea.vmem %s155, %s203 [#allocation2]
                %s206 = scalar_lea.vmem %s166, %s204
              $region45: #{_unflatten_copy_impl.1} parent=39 // loop_footer
                %s180 = sadd.s32 %s178, 1
              $region46: #{_unflatten_copy_impl.1} parent=39 // loop_footer_branch
                %177 = sbr.rel target = $region42
              $region47: #{_unflatten_copy_impl.1} parent=39 // loop_exit
                _
              %s207 = sdiv.u32.pop %s162, 7
              %s208 = srem.u32.pop %s162, 7
              %s209 = smul.u32 %s207, 7
              %s210 = smul.u32 8, %s209
              %s211 = scalar_lea.vmem %s155, %s210 [#allocation2]
              %s212 = smul.u32 8, %s209
              %s213 = scalar_lea.vmem %s166, %s212
              // While loop
              $region48: #{_unflatten_copy_impl.1} parent=39 // loop_pre_header
                _
              $region49: #{_unflatten_copy_impl.1} parent=39 // loop_header
                %s215 = sphi 0, %s217
                %p216 = scmp.ge.s32.totalorder %s215, %s208
                %s220 = sphi 0, %s227
                %s221 = sphi %s211, %s230
                %s222 = sphi %s213, %s231
              $region50: #{_unflatten_copy_impl.1} parent=39 // loop_header_branch
                %219 = sbr.rel (%p216) target = $region54
              $region51: #{_unflatten_copy_impl.1} parent=39 // loop_body
                %v223 = vld [vmem:[%s221] sm:$0xff]
                %224 = vst [vmem:[%s222] sm:$0xff] %v223
                %s225 = sadd.s32 1, %s220
                %p226 = scmp.ge.s32.totalorder %s225, %s208
                %s227 = scalar_select %p226, 0, %s225
                %s228 = smul.u32 %s227, 8
                %s229 = smul.u32 %s227, 8
                %s230 = scalar_lea.vmem %s211, %s228 [#allocation2]
                %s231 = scalar_lea.vmem %s213, %s229
              $region52: #{_unflatten_copy_impl.1} parent=39 // loop_footer
                %s217 = sadd.s32 %s215, 1
              $region53: #{_unflatten_copy_impl.1} parent=39 // loop_footer_branch
                %214 = sbr.rel target = $region49
              $region54: #{_unflatten_copy_impl.1} parent=39 // loop_exit
                _
            $region40: #{_unflatten_copy_impl.1} parent=31 // pred_fallthru
              _
          $region32: #{_unflatten_copy_impl.1} parent=27 // pred_fallthru
            _
          %293 = vnop
        $region28: #{_unflatten_copy_impl.1} parent=23 // pred_fallthru
          _
      $region24: #{_unflatten_copy_impl.1} parent=5 // pred_fallthru
        _
      %p294 = scmp.le.s32.totalorder 2, %s7
      // Predicated region
      $region77: #{_unflatten_copy_impl.1} parent=5 // pred_check
        %p295 = pneg %p294
      $region78: #{_unflatten_copy_impl.1} parent=5 // pred_check_branch
        %297 = sbr.rel (%p295) target = $region80
      $region79: #{_unflatten_copy_impl.1} parent=5 // pred_region
        %s298 = ssub.s32 %s7, 2
        // Predicated region
        $region81: #{_unflatten_copy_impl.1} parent=79 // pred_check
          %p299 = pneg %p62
        $region82: #{_unflatten_copy_impl.1} parent=79 // pred_check_branch
          %301 = sbr.rel (%p299) target = $region84
        $region83: #{_unflatten_copy_impl.1} parent=79 // pred_region
          %s302 = sand.u32 %s47, 1
          %s303 = sand.u32 %s47, 1
          %s304 = smul.addr %s303, 56
          %s305 = scalar_lea.vmem [#allocation2], %s304
        $region84: #{_unflatten_copy_impl.1} parent=79 // pred_fallthru
          _
      $region80: #{_unflatten_copy_impl.1} parent=5 // pred_fallthru
        _
    $region6: #{_unflatten_copy_impl.1} parent=1 // loop_footer
      %s11 = sadd.s32 1, %s7
    $region7: #{_unflatten_copy_impl.1} parent=1 // loop_footer_branch
      %6 = sbr.rel target = $region3
    $region8: #{_unflatten_copy_impl.1} parent=1 // loop_exit
      _

</llo_original>
